<compile_context>
chip_gen: v6e
topology: v6e:2x2x1
jax: 0.10.0
libtpu: 0.0.40
codegen_flags: <defaults>
</compile_context>

<pallas_src>
import math
import functools

import jax
import jax.numpy as jnp
from jax.experimental import pallas as pl
from jax.experimental.pallas import tpu as pltpu


def _round_up(x, m):
    return (x + m - 1) // m * m


def _gelu(h, approximate):
    if approximate:
        # tanh form -> transcendental goes to the EUP slot (VALU-relieving).
        return jax.nn.gelu(h, approximate=True)
    # Exact erf form, matching torch.nn.functional.gelu's default.
    return 0.5 * h * (1.0 + jax.lax.erf(h * (1.0 / math.sqrt(2.0))))


# --------------------------------------------------------------------------
# Kernels.
# --------------------------------------------------------------------------
def _ffn_fused_kernel(x_ref, w0_ref, b0_ref, w1_ref, b1_ref, o_ref, *,
                      approximate_gelu, compute_dtype):
    # In-kernel cast (hidden under DMA / MXU) instead of a wrapper pad+convert.
    x = x_ref[...].astype(compute_dtype)                          # (tm, D)
    h = jnp.dot(x, w0_ref[...], preferred_element_type=jnp.float32)
    h = h + b0_ref[...]                                           # (1, Hp) f32 bias
    h = _gelu(h, approximate_gelu)
    y = jnp.dot(h.astype(compute_dtype), w1_ref[...],
                preferred_element_type=jnp.float32)
    y = y + b1_ref[...]
    o_ref[...] = y.astype(o_ref.dtype)


def _ffn_chunked_kernel(x_ref, w0_ref, b0_ref, w1_ref, b1_ref, o_ref, acc_ref, *,
                        approximate_gelu, compute_dtype):
    # Grid = (row tiles, hidden chunks); accumulate y over hidden chunks.
    k = pl.program_id(1)

    @pl.when(k == 0)
    def _():
        acc_ref[...] = jnp.zeros_like(acc_ref)

    x = x_ref[...].astype(compute_dtype)                          # (tm, D)
    h = jnp.dot(x, w0_ref[...], preferred_element_type=jnp.float32)
    h = h + b0_ref[...]                                           # (1, tk)
    h = _gelu(h, approximate_gelu)
    acc_ref[...] += jnp.dot(h.astype(compute_dtype), w1_ref[...],
                            preferred_element_type=jnp.float32)

    @pl.when(k == pl.num_programs(1) - 1)
    def _():
        o_ref[...] = (acc_ref[...] + b1_ref[...]).astype(o_ref.dtype)


# --------------------------------------------------------------------------
# One-time parameter preparation (hoisted out of the per-call path).
# --------------------------------------------------------------------------
def prepare_ffn_params(w0, b0, w1, b1, compute_dtype=jnp.bfloat16):
    """w0: (hidden, dims), b0: (hidden,), w1: (dims, hidden), b1: (dims,).

    Returns pre-transposed weights in the matmul compute dtype with the hidden
    dim zero-padded to a multiple of 128 (lane-dense intermediate), plus f32
    biases shaped (1, Hp) / (1, dims).  The feature dim is left unpadded so the
    activation path never needs padding or slicing.
    """
    hidden, dims = w0.shape
    hp = _round_up(hidden, 128)
    w0t = jnp.zeros((dims, hp), compute_dtype).at[:, :hidden].set(
        w0.T.astype(compute_dtype))
    w1t = jnp.zeros((hp, dims), compute_dtype).at[:hidden, :].set(
        w1.T.astype(compute_dtype))
    b0p = jnp.zeros((1, hp), jnp.float32).at[0, :hidden].set(b0.astype(jnp.float32))
    b1p = b1.astype(jnp.float32).reshape(1, dims)
    return {"w0t": w0t, "b0": b0p, "w1t": w1t, "b1": b1p}


# --------------------------------------------------------------------------
# VMEM budgeting helpers (plain Python ints; evaluated at trace time).
# --------------------------------------------------------------------------
def _vmem_cap_bytes():
    # Per-TC physical VMEM: 64 MiB v7x, 128 MiB v5e/v6e.  Keep 15% headroom for
    # Mosaic internal scratch / semaphores.
    try:
        cap = getattr(pltpu.get_tpu_info(), "vmem_capacity_bytes", None)
    except Exception:
        cap = None
    if not cap:
        cap = 64 * 1024 * 1024
    return int(0.85 * cap)


def _fused_vmem_bytes(tm, dims, hp, bc, bx, bo):
    weights = 2 * dims * hp * bc                 # W0^T + W1^T, single-buffered
    biases = 4 * (hp + dims)
    io = 2 * tm * dims * (bx + bo)               # double-buffered x / out tiles
    interm = tm * hp * (4 + bc) + tm * dims * 4  # h f32 + h bf16 + y f32
    return weights + biases + io + interm


def _chunked_vmem_bytes(tm, dims, tk, bc, bx, bo):
    weights = 2 * 2 * dims * tk * bc             # double-buffered weight chunks
    biases = 2 * 4 * tk + 4 * dims
    io = 2 * tm * dims * (bx + bo)
    acc = tm * dims * 4
    interm = tm * tk * (4 + bc)
    return weights + biases + io + acc + interm


# --------------------------------------------------------------------------
# Wrapper.
# --------------------------------------------------------------------------
@functools.partial(
    jax.jit, static_argnames=("tm", "approximate_gelu", "out_dtype", "hidden_chunk"))
def feedforward(x, params, *, tm=512, approximate_gelu=True, out_dtype=None,
                hidden_chunk=None):
    """Fused FeedForward.  x: (..., dims); params from prepare_ffn_params().

    approximate_gelu=False selects the exact-erf GeLU (torch default form).
    out_dtype (e.g. jnp.bfloat16) halves output write traffic if downstream
    tolerates it; default mirrors x.dtype.
    hidden_chunk: None = auto (chunk the hidden dim only when resident weights
    would not fit in VMEM); an int multiple of 128 dividing the padded hidden
    forces the chunked path.
    """
    w0t, b0 = params["w0t"], params["b0"]
    w1t, b1 = params["w1t"], params["b1"]
    dims, hp = w0t.shape
    assert x.shape[-1] == dims, (x.shape, dims)
    compute_dtype = w0t.dtype
    out_dtype = x.dtype if out_dtype is None else out_dtype

    lead = x.shape[:-1]
    n = math.prod(lead) if lead else 1        # static Python int
    x2 = x.reshape(n, dims)                   # view; no HBM copy

    # Row tiling: multiples of 8 sublanes; >= 2 grid steps for medium/large n so
    # the "parallel" axis spans both TensorCores on v7x and tiles double-buffer.
    if n <= 256:
        tm_eff = n
    else:
        tm_eff = min(_round_up(tm, 8), max(256, _round_up((n + 1) // 2, 256)))
    grid_m = pl.cdiv(n, tm_eff)

    bc = jnp.dtype(compute_dtype).itemsize
    bx = jnp.dtype(x.dtype).itemsize
    bo = jnp.dtype(out_dtype).itemsize
    cap = _vmem_cap_bytes()

    cost = pl.CostEstimate(
        flops=4 * n * dims * hp,                              # two matmuls
        transcendentals=n * hp,                               # GeLU
        bytes_accessed=(n * dims * (bx + bo)                  # x in + y out
                        + 2 * dims * hp * bc                  # weights
                        + 4 * (hp + dims)))                   # biases

    fused_need = int(1.3 * _fused_vmem_bytes(tm_eff, dims, hp, bc, bx, bo))
    use_fused = (hidden_chunk is None) and (fused_need <= cap)

    if use_fused:
        vmem_limit = min(cap, max(32 * 1024 * 1024, 2 * fused_need))

        def const1(shape):
            # Constant index_map -> fetched once; single-buffered so resident
            # weights don't pay the 2x double-buffer VMEM cost.
            return pl.BlockSpec(shape, lambda i: (0, 0),
                                pipeline_mode=pl.Buffered(1))

        out = pl.pallas_call(
            functools.partial(_ffn_fused_kernel,
                              approximate_gelu=approximate_gelu,
                              compute_dtype=compute_dtype),
            out_shape=jax.ShapeDtypeStruct((n, dims), out_dtype),
            grid_spec=pltpu.PrefetchScalarGridSpec(
                num_scalar_prefetch=0,
                grid=(grid_m,),
                in_specs=[
                    pl.BlockSpec((tm_eff, dims), lambda i: (i, 0)),  # x row tile
                    const1((dims, hp)),                              # W0^T resident
                    const1((1, hp)),                                 # b0
                    const1((hp, dims)),                              # W1^T resident
                    const1((1, dims)),                               # b1
                ],
                out_specs=pl.BlockSpec((tm_eff, dims), lambda i: (i, 0)),
            ),
            compiler_params=pltpu.CompilerParams(
                dimension_semantics=("parallel",),
                vmem_limit_bytes=vmem_limit),
            cost_estimate=cost,
        )(x2, w0t, b0, w1t, b1)
        return out.reshape(*lead, dims)

    # ---- hidden-chunked path: stream weights, accumulate in f32 VMEM scratch.
    if hidden_chunk is not None:
        tk = int(hidden_chunk)
        assert tk % 128 == 0 and hp % tk == 0, (tk, hp)
    else:
        tk = 128
        for cand in (1024, 896, 768, 640, 512, 384, 256, 128):
            if hp % cand == 0 and int(
                    1.3 * _chunked_vmem_bytes(tm_eff, dims, cand, bc, bx, bo)) <= cap:
                tk = cand
                break
    grid_k = hp // tk
    chunk_need = int(1.3 * _chunked_vmem_bytes(tm_eff, dims, tk, bc, bx, bo))
    vmem_limit = min(cap, max(32 * 1024 * 1024, 2 * chunk_need))

    out = pl.pallas_call(
        functools.partial(_ffn_chunked_kernel,
                          approximate_gelu=approximate_gelu,
                          compute_dtype=compute_dtype),
        out_shape=jax.ShapeDtypeStruct((n, dims), out_dtype),
        grid_spec=pltpu.PrefetchScalarGridSpec(
            num_scalar_prefetch=0,
            grid=(grid_m, grid_k),
            in_specs=[
                pl.BlockSpec((tm_eff, dims), lambda i, k: (i, 0)),  # x (reused over k)
                pl.BlockSpec((dims, tk), lambda i, k: (0, k)),      # W0^T chunk
                pl.BlockSpec((1, tk), lambda i, k: (0, k)),         # b0 chunk
                pl.BlockSpec((tk, dims), lambda i, k: (k, 0)),      # W1^T chunk
                pl.BlockSpec((1, dims), lambda i, k: (0, 0),
                             pipeline_mode=pl.Buffered(1)),         # b1 resident
            ],
            out_specs=pl.BlockSpec((tm_eff, dims), lambda i, k: (i, 0)),
            scratch_shapes=[pltpu.VMEM((tm_eff, dims), jnp.float32)],
        ),
        compiler_params=pltpu.CompilerParams(
            dimension_semantics=("parallel", "arbitrary"),
            vmem_limit_bytes=vmem_limit),
        cost_estimate=cost,
    )(x2, w0t, b0, w1t, b1)
    return out.reshape(*lead, dims)


# --------------------------------------------------------------------------
# Init + reference (for the self-test).
# --------------------------------------------------------------------------
def init_feedforward_params(key, dims, expansion_factor):
    """Deterministic init mirroring torch.nn.Linear.reset_parameters."""
    hidden = int(expansion_factor * dims)
    k0, k1, k2, k3 = jax.random.split(key, 4)
    bound0 = 1.0 / math.sqrt(dims)
    bound1 = 1.0 / math.sqrt(hidden)
    w0 = jax.random.uniform(k0, (hidden, dims), jnp.float32, -bound0, bound0)
    b0 = jax.random.uniform(k1, (hidden,), jnp.float32, -bound0, bound0)
    w1 = jax.random.uniform(k2, (dims, hidden), jnp.float32, -bound1, bound1)
    b1 = jax.random.uniform(k3, (dims,), jnp.float32, -bound1, bound1)
    return w0, b0, w1, b1


def _reference(x, w0, b0, w1, b1):
    h = x @ w0.T + b0
    h = 0.5 * h * (1.0 + jax.lax.erf(h / math.sqrt(2.0)))   # exact erf GeLU
    return h @ w1.T + b1


if __name__ == "__main__":
    key = jax.random.PRNGKey(0)
    k1, k2, k3, k4 = jax.random.split(key, 4)

    # --- Test 1: small FFN, fused (resident-weight) path. ---
    batch, seq, dims, ef = 2, 8, 32, 2
    x = jax.random.normal(k1, (batch, seq, dims), jnp.float32)
    w0, b0, w1, b1 = init_feedforward_params(k2, dims, ef)
    params = prepare_ffn_params(w0, b0, w1, b1, compute_dtype=jnp.bfloat16)

    y = jax.block_until_ready(feedforward(x, params))
    y_ref = _reference(x, w0, b0, w1, b1)
    assert y.shape == x.shape, (y.shape, x.shape)
    err = float(jnp.max(jnp.abs(y - y_ref)))
    # bf16 MXU operands + tanh GeLU vs f32 erf reference -> loosened tolerance.
    assert err < 5e-2, err

    # Exact-erf GeLU path (bit-matches the torch default form).
    y_exact = jax.block_until_ready(feedforward(x, params, approximate_gelu=False))
    err_exact = float(jnp.max(jnp.abs(y_exact - y_ref)))
    assert err_exact < 5e-2, err_exact

    # --- Test 2: force the hidden-chunked (streaming-weight) path. ---
    dims2, ef2 = 128, 4
    x2 = jax.random.normal(k3, (batch, seq, dims2), jnp.float32)
    w0b, b0b, w1b, b1b = init_feedforward_params(k4, dims2, ef2)
    params2 = prepare_ffn_params(w0b, b0b, w1b, b1b, compute_dtype=jnp.bfloat16)

    y2 = jax.block_until_ready(feedforward(x2, params2, hidden_chunk=128))
    y2_ref = _reference(x2, w0b, b0b, w1b, b1b)
    assert y2.shape == x2.shape, (y2.shape, x2.shape)
    err2 = float(jnp.max(jnp.abs(y2 - y2_ref)))
    assert err2 < 5e-2, err2

    print("KERNEL_OK")
</pallas_src>

<mosaic_0001>
module attributes {stable_mosaic.version = 11 : i64} {
  func.func @_ffn_fused_kernel(%arg0: i32, %arg1: memref<16x32xf32, #tpu.memory_space<vmem>>, %arg2: memref<32x128xbf16, #tpu.memory_space<vmem>>, %arg3: memref<1x128xf32, #tpu.memory_space<vmem>>, %arg4: memref<128x32xbf16, #tpu.memory_space<vmem>>, %arg5: memref<1x32xf32, #tpu.memory_space<vmem>>, %arg6: memref<16x32xf32, #tpu.memory_space<vmem>>) attributes {dimension_semantics = [#tpu.dimension_semantics<parallel>], iteration_bounds = array<i64: 1>, scalar_prefetch = 0 : i64, scratch_operands = 0 : i64, tpu.core_type = #tpu.core_type<tc>, window_params = [{transform_indices = @transform_0, window_bounds = array<i64: 16, 32>}, {pipeline_mode = #tpu.pipeline_mode<synchronous>, transform_indices = @transform_1, window_bounds = array<i64: 32, 128>}, {pipeline_mode = #tpu.pipeline_mode<synchronous>, transform_indices = @transform_2, window_bounds = array<i64: 1, 128>}, {pipeline_mode = #tpu.pipeline_mode<synchronous>, transform_indices = @transform_3, window_bounds = array<i64: 128, 32>}, {pipeline_mode = #tpu.pipeline_mode<synchronous>, transform_indices = @transform_4, window_bounds = array<i64: 1, 32>}, {transform_indices = @transform_5, window_bounds = array<i64: 16, 32>}]} {
    %c0 = arith.constant 0 : index
    %c0_0 = arith.constant 0 : index
    %0 = vector.load %arg1[%c0, %c0_0] : memref<16x32xf32, #tpu.memory_space<vmem>>, vector<16x32xf32>
    %1 = arith.truncf %0 : vector<16x32xf32> to vector<16x32xbf16>
    %c0_1 = arith.constant 0 : index
    %c0_2 = arith.constant 0 : index
    %2 = vector.load %arg2[%c0_1, %c0_2] : memref<32x128xbf16, #tpu.memory_space<vmem>>, vector<32x128xbf16>
    %cst = arith.constant dense<0.000000e+00> : vector<16x128xf32>
    %3 = tpu.matmul %1, %2, %cst {dimension_numbers = #tpu.dot_dimension_numbers<[1], [0], [0], [1], [0, 0, 1, 1], [], []>} : vector<16x32xbf16>, vector<32x128xbf16>, vector<16x128xf32> -> vector<16x128xf32>
    %c0_3 = arith.constant 0 : index
    %c0_4 = arith.constant 0 : index
    %4 = vector.load %arg3[%c0_3, %c0_4] : memref<1x128xf32, #tpu.memory_space<vmem>>, vector<1x128xf32>
    %5 = vector.broadcast %4 : vector<1x128xf32> to vector<16x128xf32>
    %6 = arith.addf %3, %5 : vector<16x128xf32>
    %7 = arith.mulf %6, %6 : vector<16x128xf32>
    %8 = arith.mulf %6, %7 : vector<16x128xf32>
    %cst_5 = arith.constant 4.471500e-02 : f32
    %9 = vector.broadcast %cst_5 : f32 to vector<16x128xf32>
    %10 = arith.mulf %9, %8 : vector<16x128xf32>
    %11 = arith.addf %6, %10 : vector<16x128xf32>
    %cst_6 = arith.constant 0.797884583 : f32
    %12 = vector.broadcast %cst_6 : f32 to vector<16x128xf32>
    %13 = arith.mulf %12, %11 : vector<16x128xf32>
    %14 = math.tanh %13 : vector<16x128xf32>
    %cst_7 = arith.constant 1.000000e+00 : f32
    %15 = vector.broadcast %cst_7 : f32 to vector<16x128xf32>
    %16 = arith.addf %15, %14 : vector<16x128xf32>
    %cst_8 = arith.constant 5.000000e-01 : f32
    %17 = vector.broadcast %cst_8 : f32 to vector<16x128xf32>
    %18 = arith.mulf %17, %16 : vector<16x128xf32>
    %19 = arith.mulf %6, %18 : vector<16x128xf32>
    %20 = arith.truncf %19 : vector<16x128xf32> to vector<16x128xbf16>
    %c0_9 = arith.constant 0 : index
    %c0_10 = arith.constant 0 : index
    %21 = vector.load %arg4[%c0_9, %c0_10] : memref<128x32xbf16, #tpu.memory_space<vmem>>, vector<128x32xbf16>
    %cst_11 = arith.constant dense<0.000000e+00> : vector<16x32xf32>
    %22 = tpu.matmul %20, %21, %cst_11 {dimension_numbers = #tpu.dot_dimension_numbers<[1], [0], [0], [1], [0, 0, 1, 1], [], []>} : vector<16x128xbf16>, vector<128x32xbf16>, vector<16x32xf32> -> vector<16x32xf32>
    %c0_12 = arith.constant 0 : index
    %c0_13 = arith.constant 0 : index
    %23 = vector.load %arg5[%c0_12, %c0_13] : memref<1x32xf32, #tpu.memory_space<vmem>>, vector<1x32xf32>
    %24 = vector.broadcast %23 : vector<1x32xf32> to vector<16x32xf32>
    %25 = arith.addf %22, %24 : vector<16x32xf32>
    %c0_14 = arith.constant 0 : index
    %c0_15 = arith.constant 0 : index
    %26 = vector.load %arg6[%c0_14, %c0_15] : memref<16x32xf32, #tpu.memory_space<vmem>>, vector<16x32xf32>
    tpu.vector_store %arg6[%c0_14, %c0_15], %25 {strides = array<i32>} : memref<16x32xf32, #tpu.memory_space<vmem>>, vector<16x32xf32>,
    return
  }
  func.func @transform_0(%arg0: i32) -> (i32, i32) {
    %c0_i32 = arith.constant 0 : i32
    %c0_i32_0 = arith.constant 0 : i32
    return %arg0, %c0_i32 : i32, i32
  }
  func.func @transform_1(%arg0: i32) -> (i32, i32) {
    %c0_i32 = arith.constant 0 : i32
    %c0_i32_0 = arith.constant 0 : i32
    %c0_i32_1 = arith.constant 0 : i32
    return %c0_i32, %c0_i32_0 : i32, i32
  }
  func.func @transform_2(%arg0: i32) -> (i32, i32) {
    %c0_i32 = arith.constant 0 : i32
    %c0_i32_0 = arith.constant 0 : i32
    %c0_i32_1 = arith.constant 0 : i32
    return %c0_i32, %c0_i32_0 : i32, i32
  }
  func.func @transform_3(%arg0: i32) -> (i32, i32) {
    %c0_i32 = arith.constant 0 : i32
    %c0_i32_0 = arith.constant 0 : i32
    %c0_i32_1 = arith.constant 0 : i32
    return %c0_i32, %c0_i32_0 : i32, i32
  }
  func.func @transform_4(%arg0: i32) -> (i32, i32) {
    %c0_i32 = arith.constant 0 : i32
    %c0_i32_0 = arith.constant 0 : i32
    %c0_i32_1 = arith.constant 0 : i32
    return %c0_i32, %c0_i32_0 : i32, i32
  }
  func.func @transform_5(%arg0: i32) -> (i32, i32) {
    %c0_i32 = arith.constant 0 : i32
    %c0_i32_0 = arith.constant 0 : i32
    return %arg0, %c0_i32 : i32, i32
  }
}

</mosaic_0001>

<llo_original>
// kernel: feedforward.1
$region0: #{feedforward.1}
  #allocation0 [shape = 'u32[]', space=smem, size = 0x4, offset = 0x4, fixed_abs, tag = 'smem constant byte address 0x4 - core index']
  #allocation1 [shape = 'u32[144,128]{1,0:T(1,128)}', space=vmem, size = 0x12000, scoped, tag = 'internal scratch']
  %s0 = inlined_call_operand.vmem [shape: f32[16,32], index: 0, kind: input, shape index: {}]
  %s1 = inlined_call_operand.vmem [shape: bf16[32,128], index: 1, kind: input, shape index: {}]
  %s2 = inlined_call_operand.vmem [shape: f32[1,128], index: 2, kind: input, shape index: {}]
  %s3 = inlined_call_operand.vmem [shape: bf16[128,32], index: 3, kind: input, shape index: {}]
  %s4 = inlined_call_operand.vmem [shape: f32[1,32], index: 4, kind: input, shape index: {}]
  %s5 = inlined_call_operand.hbm [shape: f32[16,32], index: 5, kind: output, shape index: {}]
  %s6 = sld [smem:[#allocation0]]
  $region30: #{feedforward.1} parent=0
    _
  %s8 = ssub.s32 1, %s6
  %s9 = scalar_select 0, %s8, %s6
  $region1: #{feedforward.1} parent=0
    #allocation2 [shape = 'u8[8192]{0}', space=vmem, size = 0x2000, scoped, tag = 'output window, operand 0, single buffered']
    #allocation3 [shape = 's32[1]{0}', space=sflag, size = 0x4, scoped, tag = 'scoped memory for feedforward.1']
    %10 = vsyncpa [#allocation3], 0
    // Predicated region
    $region2: #{feedforward.1} parent=1 // pred_check
      _
    $region3: #{feedforward.1} parent=1 // pred_check_branch
      %12 = sbr.rel (0) target = $region5
    $region4: #{feedforward.1} parent=1 // pred_region
      _
    $region5: #{feedforward.1} parent=1 // pred_fallthru
      _
    // Predicated region
    $region6: #{feedforward.1} parent=1 // pred_check
      _
    $region7: #{feedforward.1} parent=1 // pred_check_branch
      %14 = sbr.rel (0) target = $region9
    $region8: #{feedforward.1} parent=1 // pred_region
      _
    $region9: #{feedforward.1} parent=1 // pred_fallthru
      _
    // Predicated region
    $region10: #{feedforward.1} parent=1 // pred_check
      _
    $region11: #{feedforward.1} parent=1 // pred_check_branch
      %16 = sbr.rel (0) target = $region13
    $region12: #{feedforward.1} parent=1 // pred_region
      _
    $region13: #{feedforward.1} parent=1 // pred_fallthru
      _
    // Predicated region
    $region14: #{feedforward.1} parent=1 // pred_check
      _
    $region15: #{feedforward.1} parent=1 // pred_check_branch
      %18 = sbr.rel (0) target = $region17
    $region16: #{feedforward.1} parent=1 // pred_region
      _
    $region17: #{feedforward.1} parent=1 // pred_fallthru
      _
    // Predicated region
    $region18: #{feedforward.1} parent=1 // pred_check
      _
    $region19: #{feedforward.1} parent=1 // pred_check_branch
      %20 = sbr.rel (0) target = $region21
    $region20: #{feedforward.1} parent=1 // pred_region
      _
    $region21: #{feedforward.1} parent=1 // pred_fallthru
      _
    %v22 = vld [vmem:[%s0] sm:$0xff]
    %v23 = vld [vmem:[%s0 + $0x8] sm:$0xff]
    %v24 = vpack.c.bf16 %v23, %v22
    %v25 = vld [vmem:[%s1] sm:$0xf]
    %v26 = vld [vmem:[%s1 + $0x4] sm:$0xf]
    %v27 = vld [vmem:[%s1 + $0x8] sm:$0xf]
    %v28 = vld [vmem:[%s1 + $0xc] sm:$0xf]
    %v29 = vld [vmem:[%s2] sm:$0x1]
    %v31 = vlaneseq
    %v32 = vshrl.u32 %v31, 7
    %v33 = vsub.s32 0, %v32
    %v34 = vrot.slane %v29, %v33
    %v40 = vunpack.c.l.b16 %v25
    %v41 = vunpack.c.l.b16 %v26
    %v42 = vunpack.c.l.b16 %v27
    %v43 = vunpack.c.l.b16 %v28
    %v44 = vpack.c.b16 %v41, %v40
    %v45 = vpack.c.b16 %v43, %v42
    %vm48 = vcmask 261120
    %v50 = vsel %vm48, %v24, 0
    %52 = vmatprep.subr.bf16.mxu0 0
    %53 = vmatpush1.bf16.msra.mxu0 0
    %54 = vmatprep.subr.bf16.mxu0 0
    %55 = vmatpush1.bf16.msra.mxu0 0
    %56 = vmatprep.subr.bf16.mxu0 0
    %57 = vmatpush1.bf16.msra.mxu0 0
    %58 = vmatprep.subr.bf16.mxu0 0
    %59 = vmatpush1.bf16.msra.mxu0 0
    %60 = vmatprep.subr.bf16.mxu0 0
    %61 = vmatpush1.bf16.msra.mxu0 0
    %62 = vmatprep.subr.bf16.mxu0 0
    %63 = vmatpush1.bf16.msra.mxu0 0
    %64 = vmatprep.subr.bf16.mxu0 0
    %65 = vmatpush1.bf16.msra.mxu0 %v45
    %66 = vmatprep.subr.bf16.mxu0 0
    %67 = vmatpush1.bf16.msra.mxu0 %v44
    %68 = vmatprep.subr.bf16.mxu0 0
    %69 = vmatpush2.bf16.msra.mxu0 0
    %70 = vmatprep.subr.bf16.mxu0 0
    %71 = vmatpush2.bf16.msra.mxu0 0
    %72 = vmatprep.subr.bf16.mxu0 0
    %73 = vmatpush2.bf16.msra.mxu0 0
    %74 = vmatprep.subr.bf16.mxu0 0
    %75 = vmatpush2.bf16.msra.mxu0 0
    %76 = vmatprep.subr.bf16.mxu0 0
    %77 = vmatpush2.bf16.msra.mxu0 0
    %78 = vmatprep.subr.bf16.mxu0 0
    %79 = vmatpush2.bf16.msra.mxu0 0
    %80 = vmatprep.subr.bf16.mxu0 0
    %81 = vmatpush2.bf16.msra.mxu0 0
    %82 = vmatprep.subr.bf16.mxu0 0
    %83 = vmatpush2.bf16.msra.mxu0 0
    %84 = vmatprep.mubr.bf16.mxu0 0
    %85 = vmatmul.mubr.bf16.gmra.mxu0 %v50
    %v86 = vpop.f32.mrf.mxu0
    %v87 = vadd.f32 %v34, %v86
    %v88 = vpop.f32.mrf.mxu0
    %v89 = vpop.f32.mrf.mxu0
    %v90 = vadd.f32 %v34, %v89
    %v91 = vpop.f32.mrf.mxu0
    %92 = vdwg.mxu0
    %v93 = vmul.f32 %v87, %v87
    %v94 = vmul.f32 %v90, %v90
    %v95 = vmul.f32 %v87, %v93
    %v96 = vmul.f32 %v90, %v94
    %v97 = vmul.f32 %v95, 0.044715
    %v98 = vmul.f32 %v96, 0.044715
    %v99 = vadd.f32 %v87, %v97
    %v100 = vadd.f32 %v90, %v98
    %v101 = vmul.f32 %v99, 0.7978846
    %v102 = vmul.f32 %v100, 0.7978846
    %v103 = vtanh.pop %v101
    %v104 = vtanh.pop %v102
    %v105 = vadd.f32 %v103, 1.0
    %v106 = vadd.f32 %v104, 1.0
    %v107 = vmul.f32 %v105, 0.5
    %v108 = vmul.f32 %v106, 0.5
    %v109 = vmul.f32 %v87, %v107
    %v110 = vmul.f32 %v90, %v108
    %v111 = vpack.c.bf16 %v110, %v109
    %v112 = vld [vmem:[%s3] sm:$0xf]
    %v113 = vld [vmem:[%s3 + $0x4] sm:$0xf]
    %v114 = vld [vmem:[%s3 + $0x8] sm:$0xf]
    %v115 = vld [vmem:[%s3 + $0xc] sm:$0xf]
    %v116 = vld [vmem:[%s3 + $0x10] sm:$0xf]
    %v117 = vld [vmem:[%s3 + $0x14] sm:$0xf]
    %v118 = vld [vmem:[%s3 + $0x18] sm:$0xf]
    %v119 = vld [vmem:[%s3 + $0x1c] sm:$0xf]
    %v120 = vld [vmem:[%s3 + $0x20] sm:$0xf]
    %v121 = vld [vmem:[%s3 + $0x24] sm:$0xf]
    %v122 = vld [vmem:[%s3 + $0x28] sm:$0xf]
    %v123 = vld [vmem:[%s3 + $0x2c] sm:$0xf]
    %v124 = vld [vmem:[%s3 + $0x30] sm:$0xf]
    %v125 = vld [vmem:[%s3 + $0x34] sm:$0xf]
    %v126 = vld [vmem:[%s3 + $0x38] sm:$0xf]
    %v127 = vld [vmem:[%s3 + $0x3c] sm:$0xf]
    %v128 = vld [vmem:[%s4] sm:$0x1]
    %v130 = vlaneseq
    %v131 = vshrl.u32 %v130, 7
    %v132 = vsub.s32 0, %v131
    %v133 = vrot.slane %v128, %v132
    %v151 = vunpack.c.l.b16 %v112
    %v152 = vunpack.c.l.b16 %v113
    %v153 = vunpack.c.l.b16 %v114
    %v154 = vunpack.c.l.b16 %v115
    %v155 = vunpack.c.l.b16 %v116
    %v156 = vunpack.c.l.b16 %v117
    %v157 = vunpack.c.l.b16 %v118
    %v158 = vunpack.c.l.b16 %v119
    %v159 = vunpack.c.l.b16 %v120
    %v160 = vunpack.c.l.b16 %v121
    %v161 = vunpack.c.l.b16 %v122
    %v162 = vunpack.c.l.b16 %v123
    %v163 = vunpack.c.l.b16 %v124
    %v164 = vunpack.c.l.b16 %v125
    %v165 = vunpack.c.l.b16 %v126
    %v166 = vunpack.c.l.b16 %v127
    %v167 = vpack.c.b16 %v152, %v151
    %v168 = vpack.c.b16 %v154, %v153
    %v169 = vpack.c.b16 %v156, %v155
    %v170 = vpack.c.b16 %v158, %v157
    %v171 = vpack.c.b16 %v160, %v159
    %v172 = vpack.c.b16 %v162, %v161
    %v173 = vpack.c.b16 %v164, %v163
    %v174 = vpack.c.b16 %v166, %v165
    %183 = vmatprep.subr.bf16.mxu0 0
    %184 = vmatpush1.bf16.msra.mxu0 %v174
    %185 = vmatprep.subr.bf16.mxu0 0
    %186 = vmatpush1.bf16.msra.mxu0 %v173
    %187 = vmatprep.subr.bf16.mxu0 0
    %188 = vmatpush1.bf16.msra.mxu0 %v172
    %189 = vmatprep.subr.bf16.mxu0 0
    %190 = vmatpush1.bf16.msra.mxu0 %v171
    %191 = vmatprep.subr.bf16.mxu0 0
    %192 = vmatpush1.bf16.msra.mxu0 %v170
    %193 = vmatprep.subr.bf16.mxu0 0
    %194 = vmatpush1.bf16.msra.mxu0 %v169
    %195 = vmatprep.subr.bf16.mxu0 0
    %196 = vmatpush1.bf16.msra.mxu0 %v168
    %197 = vmatprep.subr.bf16.mxu0 0
    %198 = vmatpush1.bf16.msra.mxu0 %v167
    %199 = vmatprep.subr.bf16.mxu0 0
    %200 = vmatpush2.bf16.msra.mxu0 0
    %201 = vmatprep.subr.bf16.mxu0 0
    %202 = vmatpush2.bf16.msra.mxu0 0
    %203 = vmatprep.subr.bf16.mxu0 0
    %204 = vmatpush2.bf16.msra.mxu0 0
    %205 = vmatprep.subr.bf16.mxu0 0
    %206 = vmatpush2.bf16.msra.mxu0 0
    %207 = vmatprep.subr.bf16.mxu0 0
    %208 = vmatpush2.bf16.msra.mxu0 0
    %209 = vmatprep.subr.bf16.mxu0 0
    %210 = vmatpush2.bf16.msra.mxu0 0
    %211 = vmatprep.subr.bf16.mxu0 0
    %212 = vmatpush2.bf16.msra.mxu0 0
    %213 = vmatprep.subr.bf16.mxu0 0
    %214 = vmatpush2.bf16.msra.mxu0 0
    %215 = vmatprep.mubr.bf16.mxu0 0
    %216 = vmatmul.mubr.bf16.gmra.mxu0 %v111
    %v217 = vpop.f32.mrf.mxu0
    %v218 = vadd.f32 %v133, %v217
    %v219 = vpop.f32.mrf.mxu0
    %v220 = vpop.f32.mrf.mxu0
    %v221 = vadd.f32 %v133, %v220
    %v222 = vpop.f32.mrf.mxu0
    %223 = vdwg.mxu0
    %224 = vst.msk [vmem:[#allocation2] sm:$0xff] %vm48, %v218
    %225 = vst.msk [vmem:[#allocation2 + $0x8] sm:$0xff] %vm48, %v221
    // Predicated region
    $region22: #{feedforward.1} parent=1 // pred_check
      _
    $region23: #{feedforward.1} parent=1 // pred_check_branch
      %227 = sbr.rel (0) target = $region25
    $region24: #{feedforward.1} parent=1 // pred_region
      %s229 = ssub.s32 256, 256
      %230 = vsyncadd [#allocation3], %s229
      %s231 = sshll.u32 [#allocation2], 4
      %s232 = int_to_ptr.vmem [resolvable:$true] %s231
      %237 = dma.vmem_to_hbm [thread:$0]  %s232, 256, %s5, [#allocation3], 128, 128, 8
    $region25: #{feedforward.1} parent=1 // pred_fallthru
      _
    // Predicated region
    $region26: #{feedforward.1} parent=1 // pred_check
      _
    $region27: #{feedforward.1} parent=1 // pred_check_branch
      %239 = sbr.rel (0) target = $region29
    $region28: #{feedforward.1} parent=1 // pred_region
      %240 = dma.done [#allocation3], 256
    $region29: #{feedforward.1} parent=1 // pred_fallthru
      _
    %241 = vsyncpa [#allocation3], 1

</llo_original>
